<compile_context>
chip_gen: v5e
topology: v5e:2x2
jax: 0.10.0
libtpu: 0.0.40
codegen_flags: <defaults>
</compile_context>

<pallas_src>
import jax
import jax.numpy as jnp
from jax.experimental import pallas as pl
from jax.experimental.pallas import tpu as pltpu

MARGIN = 2.0
PAIRWISE_EPS = 1e-6  # F.pairwise_distance default eps


def _contrastive_rows_kernel(o1_ref, o2_ref, lab_ref, out_ref):
    # (TB, D) blocks in VMEM; elementwise VPU + row reduction (XLU) + sqrt (EUP).
    o1 = o1_ref[...].astype(jnp.float32)          # (TB, D)
    o2 = o2_ref[...].astype(jnp.float32)          # (TB, D)
    lab = lab_ref[...].astype(jnp.float32)        # (TB, 1)

    diff = (o1 - o2) + PAIRWISE_EPS               # PyTorch adds eps to the difference
    sq = jnp.sum(diff * diff, axis=-1, keepdims=True)   # (TB, 1) == d^2
    d = jnp.sqrt(sq)                              # euclidean_distance (EUP slot)

    hinge = jnp.maximum(MARGIN - d, 0.0)
    # Use sq directly for the similar-pair term (cheaper + more accurate than d*d).
    out_ref[...] = (1.0 - lab) * sq + lab * (hinge * hinge)


def _pick_row_tile(B, D, itemsize):
    # Keep 2 inputs x 2 pipeline buffers x (TB * D * itemsize) under ~16 MiB so
    # the kernel is safe on v7x's 64 MiB VMEM while still giving large tiles.
    budget_bytes = 16 * 1024 * 1024
    tb = budget_bytes // max(1, 4 * D * itemsize)
    tb = min(tb, 1024, B)
    if B >= 8:
        tb = max(8, (tb // 8) * 8)    # keep the sublane dim a multiple of 8
    else:
        tb = B                        # block == full array dim is always legal
    return tb


def contrastive_loss(output1, output2, label):
    """output1, output2: (B, D); label: (B, 1). Returns scalar f32 loss."""
    B, D = output1.shape
    assert output2.shape == (B, D)
    assert label.shape == (B, 1)

    tb = _pick_row_tile(B, D, jnp.dtype(output1.dtype).itemsize)
    num_tiles = pl.cdiv(B, tb)

    per_row = pl.pallas_call(
        _contrastive_rows_kernel,
        out_shape=jax.ShapeDtypeStruct((B, 1), jnp.float32),
        grid_spec=pltpu.PrefetchScalarGridSpec(
            num_scalar_prefetch=0,
            grid=(num_tiles,),
            in_specs=[
                pl.BlockSpec((tb, D), lambda i: (i, 0)),
                pl.BlockSpec((tb, D), lambda i: (i, 0)),
                pl.BlockSpec((tb, 1), lambda i: (i, 0)),
            ],
            out_specs=pl.BlockSpec((tb, 1), lambda i: (i, 0)),
        ),
        compiler_params=pltpu.CompilerParams(
            dimension_semantics=("parallel",),   # batch tiles split across TCs on v7x
            vmem_limit_bytes=32 * 1024 * 1024,
        ),
    )(output1, output2, label)

    # Final reduction over B rows (tiny) + division by the true B in the wrapper.
    return jnp.sum(per_row) / jnp.float32(B)


def contrastive_loss_ref(output1, output2, label):
    diff = (output1 - output2).astype(jnp.float32) + PAIRWISE_EPS
    d = jnp.sqrt(jnp.sum(diff * diff, axis=-1, keepdims=True))
    hinge = jnp.maximum(MARGIN - d, 0.0)
    lab = label.astype(jnp.float32)
    return jnp.mean((1.0 - lab) * d * d + lab * hinge * hinge)


if __name__ == "__main__":
    key = jax.random.PRNGKey(0)

    # Small siamese embedding batch (matches the module's usage).
    k1, k2, k3, k4 = jax.random.split(key, 4)
    B, D = 8, 32
    output1 = jax.random.normal(k1, (B, D), dtype=jnp.float32)
    output2 = jax.random.normal(k2, (B, D), dtype=jnp.float32)
    label = jax.random.bernoulli(k3, 0.5, (B, 1)).astype(jnp.float32)

    loss = jax.block_until_ready(contrastive_loss(output1, output2, label))
    ref = contrastive_loss_ref(output1, output2, label)
    assert jnp.allclose(loss, ref, rtol=1e-5, atol=1e-5), (loss, ref)

    # Larger case to exercise multi-tile streaming + a partial last batch tile.
    k5, k6, k7 = jax.random.split(k4, 3)
    B2, D2 = 1200, 128
    o1b = jax.random.normal(k5, (B2, D2), dtype=jnp.float32)
    o2b = jax.random.normal(k6, (B2, D2), dtype=jnp.float32)
    labb = jax.random.bernoulli(k7, 0.5, (B2, 1)).astype(jnp.float32)

    loss2 = jax.block_until_ready(contrastive_loss(o1b, o2b, labb))
    ref2 = contrastive_loss_ref(o1b, o2b, labb)
    assert jnp.allclose(loss2, ref2, rtol=1e-5, atol=1e-5), (loss2, ref2)

    print("KERNEL_OK")
</pallas_src>

<mosaic_0001>
module attributes {stable_mosaic.version = 11 : i64} {
  func.func @_contrastive_rows_kernel(%arg0: i32, %arg1: memref<8x32xf32, #tpu.memory_space<vmem>>, %arg2: memref<8x32xf32, #tpu.memory_space<vmem>>, %arg3: memref<8x1xf32, #tpu.memory_space<vmem>>, %arg4: memref<8x1xf32, #tpu.memory_space<vmem>>) attributes {dimension_semantics = [#tpu.dimension_semantics<parallel>], iteration_bounds = array<i64: 1>, scalar_prefetch = 0 : i64, scratch_operands = 0 : i64, tpu.core_type = #tpu.core_type<tc>, window_params = [{transform_indices = @transform_0, window_bounds = array<i64: 8, 32>}, {transform_indices = @transform_1, window_bounds = array<i64: 8, 32>}, {transform_indices = @transform_2, window_bounds = array<i64: 8, 1>}, {transform_indices = @transform_3, window_bounds = array<i64: 8, 1>}]} {
    %c0 = arith.constant 0 : index
    %c0_0 = arith.constant 0 : index
    %0 = vector.load %arg1[%c0, %c0_0] : memref<8x32xf32, #tpu.memory_space<vmem>>, vector<8x32xf32>
    %c0_1 = arith.constant 0 : index
    %c0_2 = arith.constant 0 : index
    %1 = vector.load %arg2[%c0_1, %c0_2] : memref<8x32xf32, #tpu.memory_space<vmem>>, vector<8x32xf32>
    %c0_3 = arith.constant 0 : index
    %c0_4 = arith.constant 0 : index
    %2 = vector.load %arg3[%c0_3, %c0_4] : memref<8x1xf32, #tpu.memory_space<vmem>>, vector<8x1xf32>
    %3 = arith.subf %0, %1 : vector<8x32xf32>
    %cst = arith.constant 9.99999997E-7 : f32
    %4 = vector.broadcast %cst : f32 to vector<8x32xf32>
    %5 = arith.addf %3, %4 : vector<8x32xf32>
    %6 = arith.mulf %5, %5 : vector<8x32xf32>
    %cst_5 = arith.constant dense<0.000000e+00> : vector<8xf32>
    %7 = vector.multi_reduction <add>, %6, %cst_5 [1] : vector<8x32xf32> to vector<8xf32>
    %8 = vector.shape_cast %7 : vector<8xf32> to vector<8x1xf32>
    %9 = math.sqrt %8 : vector<8x1xf32>
    %cst_6 = arith.constant 2.000000e+00 : f32
    %10 = vector.broadcast %cst_6 : f32 to vector<8x1xf32>
    %11 = arith.subf %10, %9 : vector<8x1xf32>
    %cst_7 = arith.constant 0.000000e+00 : f32
    %12 = vector.broadcast %cst_7 : f32 to vector<8x1xf32>
    %13 = arith.maximumf %11, %12 : vector<8x1xf32>
    %cst_8 = arith.constant 1.000000e+00 : f32
    %14 = vector.broadcast %cst_8 : f32 to vector<8x1xf32>
    %15 = arith.subf %14, %2 : vector<8x1xf32>
    %16 = arith.mulf %15, %8 : vector<8x1xf32>
    %17 = arith.mulf %13, %13 : vector<8x1xf32>
    %18 = arith.mulf %2, %17 : vector<8x1xf32>
    %19 = arith.addf %16, %18 : vector<8x1xf32>
    %c0_9 = arith.constant 0 : index
    %c0_10 = arith.constant 0 : index
    %20 = vector.load %arg4[%c0_9, %c0_10] : memref<8x1xf32, #tpu.memory_space<vmem>>, vector<8x1xf32>
    tpu.vector_store %arg4[%c0_9, %c0_10], %19 {strides = array<i32>} : memref<8x1xf32, #tpu.memory_space<vmem>>, vector<8x1xf32>,
    return
  }
  func.func @transform_0(%arg0: i32) -> (i32, i32) {
    %c0_i32 = arith.constant 0 : i32
    %c0_i32_0 = arith.constant 0 : i32
    return %arg0, %c0_i32 : i32, i32
  }
  func.func @transform_1(%arg0: i32) -> (i32, i32) {
    %c0_i32 = arith.constant 0 : i32
    %c0_i32_0 = arith.constant 0 : i32
    return %arg0, %c0_i32 : i32, i32
  }
  func.func @transform_2(%arg0: i32) -> (i32, i32) {
    %c0_i32 = arith.constant 0 : i32
    %c0_i32_0 = arith.constant 0 : i32
    return %arg0, %c0_i32 : i32, i32
  }
  func.func @transform_3(%arg0: i32) -> (i32, i32) {
    %c0_i32 = arith.constant 0 : i32
    %c0_i32_0 = arith.constant 0 : i32
    return %arg0, %c0_i32 : i32, i32
  }
}

</mosaic_0001>

<llo_original>
// kernel: tpu_custom_call.1
$region0: #{tpu_custom_call.1}
  #allocation0 [shape = 'u32[]', space=smem, size = 0x4, offset = 0x4, fixed_abs, tag = 'smem constant byte address 0x4 - core index']
  #allocation1 [shape = 'u32[72,128]{1,0:T(1,128)}', space=vmem, size = 0x9000, scoped, tag = 'internal scratch']
  %s0 = inlined_call_operand.vmem [shape: f32[8,32], index: 0, kind: input, shape index: {}]
  %s1 = inlined_call_operand.hbm [shape: f32[8,32], index: 1, kind: input, shape index: {}]
  %s2 = inlined_call_operand.vmem [shape: f32[8,1], index: 2, kind: input, shape index: {}]
  %s3 = inlined_call_operand.vmem [shape: f32[8,1], index: 3, kind: output, shape index: {}]
  %s4 = sld [smem:[#allocation0]]
  $region26: #{tpu_custom_call.1} parent=0
    _
  %s6 = ssub.s32 1, %s4
  %s7 = scalar_select 0, %s6, %s4
  $region1: #{tpu_custom_call.1} parent=0
    #allocation2 [shape = 'u8[4096]{0}', space=vmem, size = 0x1000, scoped, tag = 'input window, operand 1, single buffered']
    #allocation3 [shape = 's32[1]{0}', space=sflag, size = 0x4, scoped, tag = 'scoped memory for tpu_custom_call.1']
    %8 = vsyncpa [#allocation3], 0
    // Predicated region
    $region2: #{tpu_custom_call.1} parent=1 // pred_check
      _
    $region3: #{tpu_custom_call.1} parent=1 // pred_check_branch
      %10 = sbr.rel (0) target = $region5
    $region4: #{tpu_custom_call.1} parent=1 // pred_region
      _
    $region5: #{tpu_custom_call.1} parent=1 // pred_fallthru
      _
    // Predicated region
    $region6: #{tpu_custom_call.1} parent=1 // pred_check
      _
    $region7: #{tpu_custom_call.1} parent=1 // pred_check_branch
      %12 = sbr.rel (0) target = $region9
    $region8: #{tpu_custom_call.1} parent=1 // pred_region
      %14 = vsyncadd [#allocation3], 0
      %s16 = sshll.u32 %s1, 4
      %s17 = int_to_ptr.hbm [resolvable:$true] %s16
      %s18 = sshll.u32 [#allocation2], 4
      %s19 = int_to_ptr.vmem [resolvable:$true] %s18
      %21 = dma.hbm_to_vmem [thread:$0]  %s17, 128, %s19, [#allocation3]
    $region9: #{tpu_custom_call.1} parent=1 // pred_fallthru
      _
    // Predicated region
    $region10: #{tpu_custom_call.1} parent=1 // pred_check
      _
    $region11: #{tpu_custom_call.1} parent=1 // pred_check_branch
      %23 = sbr.rel (0) target = $region13
    $region12: #{tpu_custom_call.1} parent=1 // pred_region
      _
    $region13: #{tpu_custom_call.1} parent=1 // pred_fallthru
      _
    // Predicated region
    $region14: #{tpu_custom_call.1} parent=1 // pred_check
      _
    $region15: #{tpu_custom_call.1} parent=1 // pred_check_branch
      %25 = sbr.rel (0) target = $region17
    $region16: #{tpu_custom_call.1} parent=1 // pred_region
      %27 = dma.done [#allocation3], 128
    $region17: #{tpu_custom_call.1} parent=1 // pred_fallthru
      _
    %v28 = vld [vmem:[%s0] sm:$0xff]
    %v29 = vld [vmem:[#allocation2] sm:$0xff]
    %v30 = vld [vmem:[%s2] sm:$0xff]
    %v31 = vsub.f32 %v28, %v29
    %v32 = vadd.f32 %v31, 1e-06
    %v33 = vmul.f32 %v32, %v32
    %vm34 = vcmask 261120
    %v35 = vsel %vm34, %v33, 0.0
    %36 = vadd.xlane.f32.xlu0 %v35
    %v37 = vpop.xlane.xlu0 %36
    %v38 = vrsqrt.pop %v37
    %v39 = vmul.f32 %v38, %v37
    %v40 = vmul.f32 %v39, %v38
    %v41 = vmul.f32 0.5, %v40
    %v42 = vsub.f32 1.5, %v41
    %v43 = vmul.f32 %v38, %v42
    %v44 = vmul.f32 %v37, %v43
    %vm45 = vcmp.eq.f32.partialorder %v37, inf
    %v46 = vsel %vm45, %v37, %v44
    %vm47 = vcmp.eq.f32.partialorder %v37, 0.0
    %v48 = vand.u32 %v37, 2147483648
    %v49 = vsel %vm47, %v48, %v46
    %v50 = vsub.f32 2.0, %v49
    %v51 = vmax.f32 %v50, 0.0
    %v52 = vsub.f32 1.0, %v30
    %v53 = vmul.f32 %v52, %v37
    %v54 = vmul.f32 %v51, %v51
    %v55 = vmul.f32 %v30, %v54
    %v56 = vadd.f32 %v53, %v55
    %vm57 = vcmask 7168
    %58 = vst.msk [vmem:[%s3] sm:$0xff] %vm57, %v56
    // Predicated region
    $region18: #{tpu_custom_call.1} parent=1 // pred_check
      _
    $region19: #{tpu_custom_call.1} parent=1 // pred_check_branch
      %60 = sbr.rel (0) target = $region21
    $region20: #{tpu_custom_call.1} parent=1 // pred_region
      _
    $region21: #{tpu_custom_call.1} parent=1 // pred_fallthru
      _
    // Predicated region
    $region22: #{tpu_custom_call.1} parent=1 // pred_check
      _
    $region23: #{tpu_custom_call.1} parent=1 // pred_check_branch
      %62 = sbr.rel (0) target = $region25
    $region24: #{tpu_custom_call.1} parent=1 // pred_region
      _
    $region25: #{tpu_custom_call.1} parent=1 // pred_fallthru
      _
    %63 = vsyncpa [#allocation3], 1

</llo_original>
